<compile_context>
chip_gen: v6e
topology: v6e:2x2x1
jax: 0.10.0
libtpu: 0.0.40
codegen_flags: <defaults>
</compile_context>

<pallas_src>
import jax
import jax.numpy as jnp
from jax.experimental import pallas as pl
from jax.experimental.pallas import tpu as pltpu


def dnn_kernel(x_ref, w_ref, b_ref, out_ref):
    # Single fused affine: out = x @ W_folded + b_folded, all f32.
    acc = jnp.dot(x_ref[...], w_ref[...], preferred_element_type=jnp.float32)
    out_ref[...] = (acc + b_ref[...]).astype(out_ref.dtype)


def _round_up(v, m):
    return ((v + m - 1) // m) * m


def dnn_forward(x, w1, b1, w2, b2, w3, b3, *,
                block_b=4096, min_rows_per_tile=512, min_pallas_batch=256):
    """x: (B, 84) f32.  Weights passed as (in, out), biases as (1, out), all f32.

    In a real serving path the fold below would be precomputed once per weight
    update; here it is a handful of tiny XLA ops per call.
    """
    B, K = x.shape
    n_out = w3.shape[1]

    # --- Fold the affine chain in f32 (exact for eval-mode dropout) ---------
    w_fold = (w1 @ w2) @ w3                       # (84, n_out)
    b_fold = (b1 @ w2) @ w3 + b2 @ w3 + b3        # (1, n_out)

    # --- Tiny batches: Pallas launch + a single grid step would dominate ----
    if B < min_pallas_batch:
        return x @ w_fold + b_fold

    # --- Batch tile choice ---------------------------------------------------
    # The kernel is HBM/overhead bound (x is ~336 B/row, output ~12 B/row), so
    # size tiles for per-step-overhead amortization and for >=~4 grid steps on
    # large batches (so v7x's 2 TCs both get work); VMEM is nowhere near a
    # constraint here (a 4096-row f32 x tile double-buffered is ~2.8 MB).
    tb = min(block_b, _round_up(pl.cdiv(B, 4), min_rows_per_tile))
    tb = min(tb, _round_up(B, 8))   # keep the sublane dim a multiple of 8
    grid = (pl.cdiv(B, tb),)        # last step may be partially OOB; Pallas
                                    # masks the out-of-bounds output rows.

    out = pl.pallas_call(
        dnn_kernel,
        out_shape=jax.ShapeDtypeStruct((B, n_out), jnp.float32),
        grid=grid,
        in_specs=[
            pl.BlockSpec((tb, K), lambda i: (i, 0)),       # batch-tiled activations (f32)
            pl.BlockSpec((K, n_out), lambda i: (0, 0)),    # VMEM-resident folded weight
            pl.BlockSpec((1, n_out), lambda i: (0, 0)),    # VMEM-resident folded bias
        ],
        out_specs=pl.BlockSpec((tb, n_out), lambda i: (i, 0)),
        compiler_params=pltpu.CompilerParams(
            dimension_semantics=("parallel",),             # shard batch across TCs (v7x)
        ),
        cost_estimate=pl.CostEstimate(
            flops=2 * B * K * n_out,
            transcendentals=0,
            bytes_accessed=(x.size * 4 + w_fold.size * 4
                            + b_fold.size * 4 + B * n_out * 4),
        ),
    )(x, w_fold, b_fold)

    return out


def init_linear(key, in_f, out_f):
    # PyTorch nn.Linear default init: U(-1/sqrt(in_f), 1/sqrt(in_f)) for W and b.
    kw, kb = jax.random.split(key)
    bound = 1.0 / jnp.sqrt(jnp.float32(in_f))
    w = jax.random.uniform(kw, (out_f, in_f), jnp.float32, -bound, bound)
    b = jax.random.uniform(kb, (out_f,), jnp.float32, -bound, bound)
    return w, b


if __name__ == "__main__":
    n_labels = 3  # ['dab', 'gun', 'elbow']
    key = jax.random.PRNGKey(0)
    k_x1, k_x2, k1, k2, k3 = jax.random.split(key, 5)

    w1, b1 = init_linear(k1, 84, 64)
    w2, b2 = init_linear(k2, 64, 16)
    w3, b3 = init_linear(k3, 16, n_labels)

    # Wrapper expects weights as (in, out) and biases as (1, out).
    params = (w1.T, b1.reshape(1, -1),
              w2.T, b2.reshape(1, -1),
              w3.T, b3.reshape(1, -1))

    def ref_forward(x):
        # Pure-JAX f32 reference of the eval-mode forward pass (dropout = id).
        return ((x @ w1.T + b1) @ w2.T + b2) @ w3.T + b3

    # Case 1: tiny batch -> XLA fast path (Pallas launch not worth it at B=8).
    x_small = jax.random.normal(k_x1, (8, 84), jnp.float32)
    out_small = jax.block_until_ready(dnn_forward(x_small, *params))
    assert out_small.shape == (8, n_labels)
    assert jnp.allclose(out_small, ref_forward(x_small), atol=1e-4, rtol=1e-4), (
        float(jnp.max(jnp.abs(out_small - ref_forward(x_small)))))

    # Case 2: batched -> Pallas path.  B=1000 is deliberately NOT a multiple of
    # the 512-row tile, so the partially out-of-bounds last grid step (masked
    # output writeback) is exercised and checked.
    x_big = jax.random.normal(k_x2, (1000, 84), jnp.float32)
    out_big = jax.block_until_ready(dnn_forward(x_big, *params))
    ref_big = ref_forward(x_big)
    assert out_big.shape == (1000, n_labels)
    assert jnp.allclose(out_big, ref_big, atol=1e-4, rtol=1e-4), (
        float(jnp.max(jnp.abs(out_big - ref_big))))

    print("KERNEL_OK")
</pallas_src>

<mosaic_0001>
module attributes {stable_mosaic.version = 11 : i64} {
  func.func @dnn_kernel(%arg0: i32, %arg1: memref<512x84xf32, #tpu.memory_space<vmem>>, %arg2: memref<84x3xf32, #tpu.memory_space<vmem>>, %arg3: memref<1x3xf32, #tpu.memory_space<vmem>>, %arg4: memref<512x3xf32, #tpu.memory_space<vmem>>) attributes {dimension_semantics = [#tpu.dimension_semantics<parallel>], iteration_bounds = array<i64: 2>, scalar_prefetch = 0 : i64, scratch_operands = 0 : i64, tpu.core_type = #tpu.core_type<tc>, window_params = [{transform_indices = @transform_0, window_bounds = array<i64: 512, 84>}, {pipeline_mode = #tpu.pipeline_mode<synchronous>, transform_indices = @transform_1, window_bounds = array<i64: 84, 3>}, {pipeline_mode = #tpu.pipeline_mode<synchronous>, transform_indices = @transform_2, window_bounds = array<i64: 1, 3>}, {transform_indices = @transform_3, window_bounds = array<i64: 512, 3>}]} {
    %c0 = arith.constant 0 : index
    %c0_0 = arith.constant 0 : index
    %0 = vector.load %arg1[%c0, %c0_0] : memref<512x84xf32, #tpu.memory_space<vmem>>, vector<512x84xf32>
    %c0_1 = arith.constant 0 : index
    %c0_2 = arith.constant 0 : index
    %1 = vector.load %arg2[%c0_1, %c0_2] : memref<84x3xf32, #tpu.memory_space<vmem>>, vector<84x3xf32>
    %cst = arith.constant dense<0.000000e+00> : vector<512x3xf32>
    %2 = tpu.matmul %0, %1, %cst {dimension_numbers = #tpu.dot_dimension_numbers<[1], [0], [0], [1], [0, 0, 1, 1], [], []>} : vector<512x84xf32>, vector<84x3xf32>, vector<512x3xf32> -> vector<512x3xf32>
    %c0_3 = arith.constant 0 : index
    %c0_4 = arith.constant 0 : index
    %3 = vector.load %arg3[%c0_3, %c0_4] : memref<1x3xf32, #tpu.memory_space<vmem>>, vector<1x3xf32>
    %4 = vector.broadcast %3 : vector<1x3xf32> to vector<512x3xf32>
    %5 = arith.addf %2, %4 : vector<512x3xf32>
    %c0_5 = arith.constant 0 : index
    %c0_6 = arith.constant 0 : index
    %6 = vector.load %arg4[%c0_5, %c0_6] : memref<512x3xf32, #tpu.memory_space<vmem>>, vector<512x3xf32>
    tpu.vector_store %arg4[%c0_5, %c0_6], %5 {strides = array<i32>} : memref<512x3xf32, #tpu.memory_space<vmem>>, vector<512x3xf32>,
    return
  }
  func.func @transform_0(%arg0: i32) -> (i32, i32) {
    %c0_i32 = arith.constant 0 : i32
    %c0_i32_0 = arith.constant 0 : i32
    return %arg0, %c0_i32 : i32, i32
  }
  func.func @transform_1(%arg0: i32) -> (i32, i32) {
    %c0_i32 = arith.constant 0 : i32
    %c0_i32_0 = arith.constant 0 : i32
    %c0_i32_1 = arith.constant 0 : i32
    return %c0_i32, %c0_i32_0 : i32, i32
  }
  func.func @transform_2(%arg0: i32) -> (i32, i32) {
    %c0_i32 = arith.constant 0 : i32
    %c0_i32_0 = arith.constant 0 : i32
    %c0_i32_1 = arith.constant 0 : i32
    return %c0_i32, %c0_i32_0 : i32, i32
  }
  func.func @transform_3(%arg0: i32) -> (i32, i32) {
    %c0_i32 = arith.constant 0 : i32
    %c0_i32_0 = arith.constant 0 : i32
    return %arg0, %c0_i32 : i32, i32
  }
}

</mosaic_0001>

<llo_original>
// kernel: tpu_custom_call.1
$region0: #{tpu_custom_call.1}
  #allocation0 [shape = 'u32[]', space=smem, size = 0x4, offset = 0x4, fixed_abs, tag = 'smem constant byte address 0x4 - core index']
  #allocation1 [shape = 'u32[144,128]{1,0:T(1,128)}', space=vmem, size = 0x12000, scoped, tag = 'internal scratch']
  %s0 = inlined_call_operand.vmem [shape: f32[1000,84], index: 0, kind: input, shape index: {}]
  %s1 = inlined_call_operand.vmem [shape: f32[84,3], index: 1, kind: input, shape index: {}]
  %s2 = inlined_call_operand.vmem [shape: f32[1,3], index: 2, kind: input, shape index: {}]
  %s3 = inlined_call_operand.vmem [shape: f32[1000,3], index: 3, kind: output, shape index: {}]
  %s4 = sld [smem:[#allocation0]]
  $region93: #{tpu_custom_call.1} parent=0
    _
  %s6 = ssub.s32 1, %s4
  %s7 = scalar_select 0, %s6, %s4
  $region1: #{tpu_custom_call.1} parent=0
    #allocation2 [shape = 'u8[524288]{0}', space=vmem, size = 0x80000, scoped, tag = 'output window, operand 0']
    loop: start=0, step=1, limit=4
    $region2: #{tpu_custom_call.1} parent=1 // loop_pre_header
      _
    $region3: #{tpu_custom_call.1} parent=1 // loop_header
      %s9 = sphi 0, %s13
      %p10 = scmp.ge.s32.totalorder %s9, 4
      %s19 = sphi 0, %s21
      %s22 = sphi 0, %s19
      %s23 = sphi 0, %s22
      %s39 = sphi 0, %s23
      %s43 = sphi 0, %s43
      %s45 = sphi 0, %s43
      %s46 = sphi 0, %s45
      %s60 = sphi 0, %s46
      %s64 = sphi 0, %s64
      %s66 = sphi 0, %s64
      %s67 = sphi 0, %s66
      %s81 = sphi 0, %s67
      %s87 = sphi 0, %s89
      %s90 = sphi 0, %s87
      %s91 = sphi 0, %s90
      %s107 = sphi 0, %s91
    $region4: #{tpu_custom_call.1} parent=1 // loop_header_branch
      %12 = sbr.rel (%p10) target = $region8
    $region5: #{tpu_custom_call.1} parent=1 // loop_body
      %s14 = ssub.s32 %s9, 1
      %s15 = ssub.s32 %s9, 2
      %s16 = sadd.s32 %s9, 1
      %s17 = ssub.s32 %s9, %s16
      %p18 = scmp.eq.s32.totalorder %s17, 0
      %s20 = sadd.s32 %s19, 1
      %s21 = scalar_select %p18, %s19, %s20
      %p24 = pneg %p18
      %p25 = scmp.eq.s32.totalorder %s9, 1
      %p26 = por %p24, %p25
      %p27 = scmp.ne.s32.totalorder %s19, %s22
      %p28 = scmp.eq.s32.totalorder %s9, 0
      %p29 = por %p27, %p28
      %p30 = scmp.ne.s32.totalorder %s19, %s22
      %p31 = scmp.eq.s32.totalorder %s14, 1
      %p32 = por %p30, %p31
      %p33 = scmp.ne.s32.totalorder %s22, %s23
      %p34 = scmp.eq.s32.totalorder %s14, 0
      %p35 = por %p33, %p34
      %p36 = scmp.ne.s32.totalorder %s22, %s23
      %p37 = scmp.eq.s32.totalorder %s15, 1
      %p38 = por %p36, %p37
      %p40 = scmp.ne.s32.totalorder %s23, %s39
      %p41 = scmp.eq.s32.totalorder %s15, 0
      %p42 = por %p40, %p41
      %s44 = sadd.s32 %s43, 1
      %p47 = scmp.eq.s32.totalorder %s9, 1
      %p48 = scmp.ne.s32.totalorder %s43, %s45
      %p49 = scmp.eq.s32.totalorder %s9, 0
      %p50 = por %p48, %p49
      %p51 = scmp.ne.s32.totalorder %s43, %s45
      %p52 = scmp.eq.s32.totalorder %s14, 1
      %p53 = por %p51, %p52
      %p54 = scmp.ne.s32.totalorder %s45, %s46
      %p55 = scmp.eq.s32.totalorder %s14, 0
      %p56 = por %p54, %p55
      %p57 = scmp.ne.s32.totalorder %s45, %s46
      %p58 = scmp.eq.s32.totalorder %s15, 1
      %p59 = por %p57, %p58
      %p61 = scmp.ne.s32.totalorder %s46, %s60
      %p62 = scmp.eq.s32.totalorder %s15, 0
      %p63 = por %p61, %p62
      %s65 = sadd.s32 %s64, 1
      %p68 = scmp.eq.s32.totalorder %s9, 1
      %p69 = scmp.ne.s32.totalorder %s64, %s66
      %p70 = scmp.eq.s32.totalorder %s9, 0
      %p71 = por %p69, %p70
      %p72 = scmp.ne.s32.totalorder %s64, %s66
      %p73 = scmp.eq.s32.totalorder %s14, 1
      %p74 = por %p72, %p73
      %p75 = scmp.ne.s32.totalorder %s66, %s67
      %p76 = scmp.eq.s32.totalorder %s14, 0
      %p77 = por %p75, %p76
      %p78 = scmp.ne.s32.totalorder %s66, %s67
      %p79 = scmp.eq.s32.totalorder %s15, 1
      %p80 = por %p78, %p79
      %p82 = scmp.ne.s32.totalorder %s67, %s81
      %p83 = scmp.eq.s32.totalorder %s15, 0
      %p84 = por %p82, %p83
      %s85 = ssub.s32 %s9, %s16
      %p86 = scmp.eq.s32.totalorder %s85, 0
      %s88 = sadd.s32 %s87, 1
      %s89 = scalar_select %p86, %s87, %s88
      %p92 = pneg %p86
      %p93 = scmp.eq.s32.totalorder %s9, 1
      %p94 = por %p92, %p93
      %p95 = scmp.ne.s32.totalorder %s87, %s90
      %p96 = scmp.eq.s32.totalorder %s9, 0
      %p97 = por %p95, %p96
      %p98 = scmp.ne.s32.totalorder %s87, %s90
      %p99 = scmp.eq.s32.totalorder %s14, 1
      %p100 = por %p98, %p99
      %p101 = scmp.ne.s32.totalorder %s90, %s91
      %p102 = scmp.eq.s32.totalorder %s14, 0
      %p103 = por %p101, %p102
      %p104 = scmp.ne.s32.totalorder %s90, %s91
      %p105 = scmp.eq.s32.totalorder %s15, 1
      %p106 = por %p104, %p105
      %p108 = scmp.ne.s32.totalorder %s91, %s107
      %p109 = scmp.eq.s32.totalorder %s15, 0
      %p110 = por %p108, %p109
      %p111 = scmp.le.s32.totalorder 1, %s9
      %p112 = scmp.lt.s32.totalorder %s9, 3
      %p113 = pnand %p111, %p112
      %p114 = pneg %p113
      // Predicated region
      $region9: #{tpu_custom_call.1} parent=5 // pred_check
        _
      $region10: #{tpu_custom_call.1} parent=5 // pred_check_branch
        %116 = sbr.rel (%p113) target = $region12
      $region11: #{tpu_custom_call.1} parent=5 // pred_region
        %s117 = ssub.s32 %s9, 1
        // Predicated region
        $region13: #{tpu_custom_call.1} parent=11 // pred_check
          %p118 = pneg %p56
        $region14: #{tpu_custom_call.1} parent=11 // pred_check_branch
          %120 = sbr.rel (%p118) target = $region16
        $region15: #{tpu_custom_call.1} parent=11 // pred_region
          _
        $region16: #{tpu_custom_call.1} parent=11 // pred_fallthru
          _
        // Predicated region
        $region17: #{tpu_custom_call.1} parent=11 // pred_check
          %p121 = pneg %p77
        $region18: #{tpu_custom_call.1} parent=11 // pred_check_branch
          %123 = sbr.rel (%p121) target = $region20
        $region19: #{tpu_custom_call.1} parent=11 // pred_region
          _
        $region20: #{tpu_custom_call.1} parent=11 // pred_fallthru
          _
      $region12: #{tpu_custom_call.1} parent=5 // pred_fallthru
        _
      %p124 = scmp.lt.s32.totalorder %s9, 2
      // Predicated region
      $region21: #{tpu_custom_call.1} parent=5 // pred_check
        %p125 = pneg %p124
      $region22: #{tpu_custom_call.1} parent=5 // pred_check_branch
        %127 = sbr.rel (%p125) target = $region24
      $region23: #{tpu_custom_call.1} parent=5 // pred_region
        // Predicated region
        $region25: #{tpu_custom_call.1} parent=23 // pred_check
          %p128 = pneg %p29
        $region26: #{tpu_custom_call.1} parent=23 // pred_check_branch
          %130 = sbr.rel (%p128) target = $region28
        $region27: #{tpu_custom_call.1} parent=23 // pred_region
          %s131 = smul.u32 64, %s9
          %s132 = ssub.s32 125, %s131
          %p133 = scmp.lt.s32.totalorder %s132, 64
          %s134 = scalar_select %p133, %s132, 64
          %s135 = smul.u32 128, %s134
          %p136 = scmp.lt.s32.totalorder %s131, 124
          %s137 = scalar_select %p136, %s131, 124
          %s138 = smul.addr %s137, 8
          %s139 = scalar_lea.vmem %s0, %s138
          %s140 = smul.u32 64, %s9
          %s141 = ssub.s32 125, %s140
          %p142 = scmp.lt.s32.totalorder %s141, 64
          %s143 = scalar_select %p142, %s141, 64
          %s144 = smul.u32 128, %s143
        $region28: #{tpu_custom_call.1} parent=23 // pred_fallthru
          _
      $region24: #{tpu_custom_call.1} parent=5 // pred_fallthru
        _
      %p145 = scmp.le.s32.totalorder 1, %s9
      %p146 = scmp.lt.s32.totalorder %s9, 3
      %p147 = pnand %p145, %p146
      %p148 = pneg %p147
      // Predicated region
      $region29: #{tpu_custom_call.1} parent=5 // pred_check
        _
      $region30: #{tpu_custom_call.1} parent=5 // pred_check_branch
        %150 = sbr.rel (%p147) target = $region32
      $region31: #{tpu_custom_call.1} parent=5 // pred_region
        %s151 = ssub.s32 %s9, 1
        %s152 = smul.u32 64, %s14
        %s153 = ssub.s32 125, %s152
        %p154 = scmp.lt.s32.totalorder %s153, 64
        %s155 = scalar_select %p154, %s153, 64
        %s156 = smul.u32 128, %s155
        %p157 = scmp.lt.s32.totalorder %s152, 124
        %s158 = scalar_select %p157, %s152, 124
        %s159 = smul.addr %s158, 8
        %s160 = scalar_lea.vmem %s0, %s159
        %p161 = pneg %p35
        %p162 = pneg %p32
        %p163 = pneg %p56
        %p164 = pneg %p53
        %p165 = pneg %p77
        %p166 = pneg %p74
        %p167 = pneg %p103
        %p168 = pneg %p100
        %s169 = sand.u32 %s90, 1
        %s170 = sand.u32 %s90, 1
        %s171 = smul.addr %s170, 512
        %s172 = scalar_lea.vmem [#allocation2], %s171
        %s173 = smul.u32 64, %s14
        %s174 = ssub.s32 125, %s173
        %p175 = scmp.lt.s32.totalorder %s174, 64
        %s176 = scalar_select %p175, %s174, 64
        %s177 = smul.u32 128, %s176
        %p178 = scmp.lt.s32.totalorder %s173, 124
        %s179 = scalar_select %p178, %s173, 124
        %s180 = smul.addr %s179, 8
        %s181 = scalar_lea.vmem %s0, %s180
        %s182 = smul.u32 64, %s14
        %s183 = ssub.s32 125, %s182
        %p184 = scmp.lt.s32.totalorder %s183, 64
        %s185 = scalar_select %p184, %s183, 64
        %s186 = smul.u32 128, %s185
        %s187 = smul.u32 64, %s14
        %s188 = ssub.s32 125, %s187
        %p189 = scmp.lt.s32.totalorder %s188, 64
        %s190 = scalar_select %p189, %s188, 64
        %s191 = smul.u32 128, %s190
        %v192 = vld [vmem:[%s181] sm:$0xff]
        %v193 = vld [vmem:[%s181 + $0x8] sm:$0xff]
        %v194 = vld [vmem:[%s181 + $0x10] sm:$0xff]
        %v195 = vld [vmem:[%s181 + $0x18] sm:$0xff]
        %v196 = vld [vmem:[%s181 + $0x20] sm:$0xff]
        %v197 = vld [vmem:[%s181 + $0x28] sm:$0xff]
        %v198 = vld [vmem:[%s181 + $0x30] sm:$0xff]
        %v199 = vld [vmem:[%s181 + $0x38] sm:$0xff]
        %v200 = vld [vmem:[%s181 + $0x40] sm:$0xff]
        %v201 = vld [vmem:[%s181 + $0x48] sm:$0xff]
        %v202 = vld [vmem:[%s181 + $0x50] sm:$0xff]
        %v203 = vld [vmem:[%s181 + $0x58] sm:$0xff]
        %v204 = vld [vmem:[%s181 + $0x60] sm:$0xff]
        %v205 = vld [vmem:[%s181 + $0x68] sm:$0xff]
        %v206 = vld [vmem:[%s181 + $0x70] sm:$0xff]
        %v207 = vld [vmem:[%s181 + $0x78] sm:$0xff]
        %v208 = vld [vmem:[%s181 + $0x80] sm:$0xff]
        %v209 = vld [vmem:[%s181 + $0x88] sm:$0xff]
        %v210 = vld [vmem:[%s181 + $0x90] sm:$0xff]
        %v211 = vld [vmem:[%s181 + $0x98] sm:$0xff]
        %v212 = vld [vmem:[%s181 + $0xa0] sm:$0xff]
        %v213 = vld [vmem:[%s181 + $0xa8] sm:$0xff]
        %v214 = vld [vmem:[%s181 + $0xb0] sm:$0xff]
        %v215 = vld [vmem:[%s181 + $0xb8] sm:$0xff]
        %v216 = vld [vmem:[%s181 + $0xc0] sm:$0xff]
        %v217 = vld [vmem:[%s181 + $0xc8] sm:$0xff]
        %v218 = vld [vmem:[%s181 + $0xd0] sm:$0xff]
        %v219 = vld [vmem:[%s181 + $0xd8] sm:$0xff]
        %v220 = vld [vmem:[%s181 + $0xe0] sm:$0xff]
        %v221 = vld [vmem:[%s181 + $0xe8] sm:$0xff]
        %v222 = vld [vmem:[%s181 + $0xf0] sm:$0xff]
        %v223 = vld [vmem:[%s181 + $0xf8] sm:$0xff]
        %v224 = vld [vmem:[%s181 + $0x100] sm:$0xff]
        %v225 = vld [vmem:[%s181 + $0x108] sm:$0xff]
        %v226 = vld [vmem:[%s181 + $0x110] sm:$0xff]
        %v227 = vld [vmem:[%s181 + $0x118] sm:$0xff]
        %v228 = vld [vmem:[%s181 + $0x120] sm:$0xff]
        %v229 = vld [vmem:[%s181 + $0x128] sm:$0xff]
        %v230 = vld [vmem:[%s181 + $0x130] sm:$0xff]
        %v231 = vld [vmem:[%s181 + $0x138] sm:$0xff]
        %v232 = vld [vmem:[%s181 + $0x140] sm:$0xff]
        %v233 = vld [vmem:[%s181 + $0x148] sm:$0xff]
        %v234 = vld [vmem:[%s181 + $0x150] sm:$0xff]
        %v235 = vld [vmem:[%s181 + $0x158] sm:$0xff]
        %v236 = vld [vmem:[%s181 + $0x160] sm:$0xff]
        %v237 = vld [vmem:[%s181 + $0x168] sm:$0xff]
        %v238 = vld [vmem:[%s181 + $0x170] sm:$0xff]
        %v239 = vld [vmem:[%s181 + $0x178] sm:$0xff]
        %v240 = vld [vmem:[%s181 + $0x180] sm:$0xff]
        %v241 = vld [vmem:[%s181 + $0x188] sm:$0xff]
        %v242 = vld [vmem:[%s181 + $0x190] sm:$0xff]
        %v243 = vld [vmem:[%s181 + $0x198] sm:$0xff]
        %v244 = vld [vmem:[%s181 + $0x1a0] sm:$0xff]
        %v245 = vld [vmem:[%s181 + $0x1a8] sm:$0xff]
        %v246 = vld [vmem:[%s181 + $0x1b0] sm:$0xff]
        %v247 = vld [vmem:[%s181 + $0x1b8] sm:$0xff]
        %v248 = vld [vmem:[%s181 + $0x1c0] sm:$0xff]
        %v249 = vld [vmem:[%s181 + $0x1c8] sm:$0xff]
        %v250 = vld [vmem:[%s181 + $0x1d0] sm:$0xff]
        %v251 = vld [vmem:[%s181 + $0x1d8] sm:$0xff]
        %v252 = vld [vmem:[%s181 + $0x1e0] sm:$0xff]
        %v253 = vld [vmem:[%s181 + $0x1e8] sm:$0xff]
        %v254 = vld [vmem:[%s181 + $0x1f0] sm:$0xff]
        %v255 = vld [vmem:[%s181 + $0x1f8] sm:$0xff]
        %v256 = vld [vmem:[%s1] sm:$0xff]
        %v257 = vld [vmem:[%s1 + $0x8] sm:$0xff]
        %v258 = vld [vmem:[%s1 + $0x10] sm:$0xff]
        %v259 = vld [vmem:[%s1 + $0x18] sm:$0xff]
        %v260 = vld [vmem:[%s1 + $0x20] sm:$0xff]
        %v261 = vld [vmem:[%s1 + $0x28] sm:$0xff]
        %v262 = vld [vmem:[%s1 + $0x30] sm:$0xff]
        %v263 = vld [vmem:[%s1 + $0x38] sm:$0xff]
        %v264 = vld [vmem:[%s1 + $0x40] sm:$0xff]
        %v265 = vld [vmem:[%s1 + $0x48] sm:$0xff]
        %v266 = vld [vmem:[%s1 + $0x50] sm:$0xf]
        %v267 = vld [vmem:[%s2] sm:$0x1]
        %v269 = vlaneseq
        %v270 = vshrl.u32 %v269, 7
        %v271 = vsub.s32 0, %v270
        %v272 = vrot.slane %v267, %v271
        %vm274 = vcmask 687104
        %v276 = vsel %vm274, %v192, 0
        %v279 = vsel %vm274, %v193, 0
        %v282 = vsel %vm274, %v194, 0
        %v285 = vsel %vm274, %v195, 0
        %v288 = vsel %vm274, %v196, 0
        %v291 = vsel %vm274, %v197, 0
        %v294 = vsel %vm274, %v198, 0
        %v297 = vsel %vm274, %v199, 0
        %v300 = vsel %vm274, %v200, 0
        %v303 = vsel %vm274, %v201, 0
        %v306 = vsel %vm274, %v202, 0
        %v309 = vsel %vm274, %v203, 0
        %v312 = vsel %vm274, %v204, 0
        %v315 = vsel %vm274, %v205, 0
        %v318 = vsel %vm274, %v206, 0
        %v321 = vsel %vm274, %v207, 0
        %v324 = vsel %vm274, %v208, 0
        %v327 = vsel %vm274, %v209, 0
        %v330 = vsel %vm274, %v210, 0
        %v333 = vsel %vm274, %v211, 0
        %v336 = vsel %vm274, %v212, 0
        %v339 = vsel %vm274, %v213, 0
        %v342 = vsel %vm274, %v214, 0
        %v345 = vsel %vm274, %v215, 0
        %v348 = vsel %vm274, %v216, 0
        %v351 = vsel %vm274, %v217, 0
        %v354 = vsel %vm274, %v218, 0
        %v357 = vsel %vm274, %v219, 0
        %v360 = vsel %vm274, %v220, 0
        %v363 = vsel %vm274, %v221, 0
        %v366 = vsel %vm274, %v222, 0
        %v369 = vsel %vm274, %v223, 0
        %v372 = vsel %vm274, %v224, 0
        %v375 = vsel %vm274, %v225, 0
        %v378 = vsel %vm274, %v226, 0
        %v381 = vsel %vm274, %v227, 0
        %v384 = vsel %vm274, %v228, 0
        %v387 = vsel %vm274, %v229, 0
        %v390 = vsel %vm274, %v230, 0
        %v393 = vsel %vm274, %v231, 0
        %v396 = vsel %vm274, %v232, 0
        %v399 = vsel %vm274, %v233, 0
        %v402 = vsel %vm274, %v234, 0
        %v405 = vsel %vm274, %v235, 0
        %v408 = vsel %vm274, %v236, 0
        %v411 = vsel %vm274, %v237, 0
        %v414 = vsel %vm274, %v238, 0
        %v417 = vsel %vm274, %v239, 0
        %v420 = vsel %vm274, %v240, 0
        %v423 = vsel %vm274, %v241, 0
        %v426 = vsel %vm274, %v242, 0
        %v429 = vsel %vm274, %v243, 0
        %v432 = vsel %vm274, %v244, 0
        %v435 = vsel %vm274, %v245, 0
        %v438 = vsel %vm274, %v246, 0
        %v441 = vsel %vm274, %v247, 0
        %v444 = vsel %vm274, %v248, 0
        %v447 = vsel %vm274, %v249, 0
        %v450 = vsel %vm274, %v250, 0
        %v453 = vsel %vm274, %v251, 0
        %v456 = vsel %vm274, %v252, 0
        %v459 = vsel %vm274, %v253, 0
        %v462 = vsel %vm274, %v254, 0
        %v465 = vsel %vm274, %v255, 0
        %vm467 = vcmask 1043456
        %v469 = vsel %vm467, %v266, 0
        %471 = vmatprep.subr.mxu0 0.0
        %472 = vmatpush1.msra.mxu0 0.0
        %473 = vmatprep.subr.mxu0 0.0
        %474 = vmatpush1.msra.mxu0 0.0
        %475 = vmatprep.subr.mxu0 0.0
        %476 = vmatpush1.msra.mxu0 0.0
        %477 = vmatprep.subr.mxu0 0.0
        %478 = vmatpush1.msra.mxu0 0.0
        %479 = vmatprep.subr.mxu0 0.0
        %480 = vmatpush1.msra.mxu0 0.0
        %481 = vmatprep.subr.mxu0 0.0
        %482 = vmatpush1.msra.mxu0 %v469
        %483 = vmatprep.subr.mxu0 0.0
        %484 = vmatpush1.msra.mxu0 %v265
        %485 = vmatprep.subr.mxu0 0.0
        %486 = vmatpush1.msra.mxu0 %v264
        %487 = vmatprep.subr.mxu0 0.0
        %488 = vmatpush1.msra.mxu0 %v263
        %489 = vmatprep.subr.mxu0 0.0
        %490 = vmatpush1.msra.mxu0 %v262
        %491 = vmatprep.subr.mxu0 0.0
        %492 = vmatpush1.msra.mxu0 %v261
        %493 = vmatprep.subr.mxu0 0.0
        %494 = vmatpush1.msra.mxu0 %v260
        %495 = vmatprep.subr.mxu0 0.0
        %496 = vmatpush1.msra.mxu0 %v259
        %497 = vmatprep.subr.mxu0 0.0
        %498 = vmatpush1.msra.mxu0 %v258
        %499 = vmatprep.subr.mxu0 0.0
        %500 = vmatpush1.msra.mxu0 %v257
        %501 = vmatprep.subr.mxu0 0.0
        %502 = vmatpush1.msra.mxu0 %v256
        %503 = vmatprep.subr.mxu0 0.0
        %504 = vmatpush2.msra.mxu0 0.0
        %505 = vmatprep.subr.mxu0 0.0
        %506 = vmatpush2.msra.mxu0 0.0
        %507 = vmatprep.subr.mxu0 0.0
        %508 = vmatpush2.msra.mxu0 0.0
        %509 = vmatprep.subr.mxu0 0.0
        %510 = vmatpush2.msra.mxu0 0.0
        %511 = vmatprep.subr.mxu0 0.0
        %512 = vmatpush2.msra.mxu0 0.0
        %513 = vmatprep.subr.mxu0 0.0
        %514 = vmatpush2.msra.mxu0 0.0
        %515 = vmatprep.subr.mxu0 0.0
        %516 = vmatpush2.msra.mxu0 0.0
        %517 = vmatprep.subr.mxu0 0.0
        %518 = vmatpush2.msra.mxu0 0.0
        %519 = vmatprep.subr.mxu0 0.0
        %520 = vmatpush2.msra.mxu0 0.0
        %521 = vmatprep.subr.mxu0 0.0
        %522 = vmatpush2.msra.mxu0 0.0
        %523 = vmatprep.subr.mxu0 0.0
        %524 = vmatpush2.msra.mxu0 0.0
        %525 = vmatprep.subr.mxu0 0.0
        %526 = vmatpush2.msra.mxu0 0.0
        %527 = vmatprep.subr.mxu0 0.0
        %528 = vmatpush2.msra.mxu0 0.0
        %529 = vmatprep.subr.mxu0 0.0
        %530 = vmatpush2.msra.mxu0 0.0
        %531 = vmatprep.subr.mxu0 0.0
        %532 = vmatpush2.msra.mxu0 0.0
        %533 = vmatprep.subr.mxu0 0.0
        %534 = vmatpush2.msra.mxu0 0.0
        %535 = vmatprep.mubr.f32.mxu0 0.0
        %536 = vmatmul.mubr.f32.gmra.mxu0 %v276
        %v537 = vpop.f32.mrf.mxu0
        %v538 = vadd.f32 %v272, %v537
        %v539 = vpop.f32.mrf.mxu0
        %540 = vmatprep.mubr.f32.mxu0 0.0
        %541 = vmatmul.mubr.f32.gmra.mxu0 %v279
        %v542 = vpop.f32.mrf.mxu0
        %v543 = vadd.f32 %v272, %v542
        %v544 = vpop.f32.mrf.mxu0
        %545 = vmatprep.mubr.f32.mxu0 0.0
        %546 = vmatmul.mubr.f32.gmra.mxu0 %v282
        %v547 = vpop.f32.mrf.mxu0
        %v548 = vadd.f32 %v272, %v547
        %v549 = vpop.f32.mrf.mxu0
        %550 = vmatprep.mubr.f32.mxu0 0.0
        %551 = vmatmul.mubr.f32.gmra.mxu0 %v285
        %v552 = vpop.f32.mrf.mxu0
        %v553 = vadd.f32 %v272, %v552
        %v554 = vpop.f32.mrf.mxu0
        %555 = vmatprep.mubr.f32.mxu0 0.0
        %556 = vmatmul.mubr.f32.gmra.mxu0 %v288
        %v557 = vpop.f32.mrf.mxu0
        %v558 = vadd.f32 %v272, %v557
        %v559 = vpop.f32.mrf.mxu0
        %560 = vmatprep.mubr.f32.mxu0 0.0
        %561 = vmatmul.mubr.f32.gmra.mxu0 %v291
        %v562 = vpop.f32.mrf.mxu0
        %v563 = vadd.f32 %v272, %v562
        %v564 = vpop.f32.mrf.mxu0
        %565 = vmatprep.mubr.f32.mxu0 0.0
        %566 = vmatmul.mubr.f32.gmra.mxu0 %v294
        %v567 = vpop.f32.mrf.mxu0
        %v568 = vadd.f32 %v272, %v567
        %v569 = vpop.f32.mrf.mxu0
        %570 = vmatprep.mubr.f32.mxu0 0.0
        %571 = vmatmul.mubr.f32.gmra.mxu0 %v297
        %v572 = vpop.f32.mrf.mxu0
        %v573 = vadd.f32 %v272, %v572
        %v574 = vpop.f32.mrf.mxu0
        %575 = vmatprep.mubr.f32.mxu0 0.0
        %576 = vmatmul.mubr.f32.gmra.mxu0 %v300
        %v577 = vpop.f32.mrf.mxu0
        %v578 = vadd.f32 %v272, %v577
        %v579 = vpop.f32.mrf.mxu0
        %580 = vmatprep.mubr.f32.mxu0 0.0
        %581 = vmatmul.mubr.f32.gmra.mxu0 %v303
        %v582 = vpop.f32.mrf.mxu0
        %v583 = vadd.f32 %v272, %v582
        %v584 = vpop.f32.mrf.mxu0
        %585 = vmatprep.mubr.f32.mxu0 0.0
        %586 = vmatmul.mubr.f32.gmra.mxu0 %v306
        %v587 = vpop.f32.mrf.mxu0
        %v588 = vadd.f32 %v272, %v587
        %v589 = vpop.f32.mrf.mxu0
        %590 = vmatprep.mubr.f32.mxu0 0.0
        %591 = vmatmul.mubr.f32.gmra.mxu0 %v309
        %v592 = vpop.f32.mrf.mxu0
        %v593 = vadd.f32 %v272, %v592
        %v594 = vpop.f32.mrf.mxu0
        %595 = vmatprep.mubr.f32.mxu0 0.0
        %596 = vmatmul.mubr.f32.gmra.mxu0 %v312
        %v597 = vpop.f32.mrf.mxu0
        %v598 = vadd.f32 %v272, %v597
        %v599 = vpop.f32.mrf.mxu0
        %600 = vmatprep.mubr.f32.mxu0 0.0
        %601 = vmatmul.mubr.f32.gmra.mxu0 %v315
        %v602 = vpop.f32.mrf.mxu0
        %v603 = vadd.f32 %v272, %v602
        %v604 = vpop.f32.mrf.mxu0
        %605 = vmatprep.mubr.f32.mxu0 0.0
        %606 = vmatmul.mubr.f32.gmra.mxu0 %v318
        %v607 = vpop.f32.mrf.mxu0
        %v608 = vadd.f32 %v272, %v607
        %v609 = vpop.f32.mrf.mxu0
        %610 = vmatprep.mubr.f32.mxu0 0.0
        %611 = vmatmul.mubr.f32.gmra.mxu0 %v321
        %v612 = vpop.f32.mrf.mxu0
        %v613 = vadd.f32 %v272, %v612
        %v614 = vpop.f32.mrf.mxu0
        %615 = vmatprep.mubr.f32.mxu0 0.0
        %616 = vmatmul.mubr.f32.gmra.mxu0 %v324
        %v617 = vpop.f32.mrf.mxu0
        %v618 = vadd.f32 %v272, %v617
        %v619 = vpop.f32.mrf.mxu0
        %620 = vmatprep.mubr.f32.mxu0 0.0
        %621 = vmatmul.mubr.f32.gmra.mxu0 %v327
        %v622 = vpop.f32.mrf.mxu0
        %v623 = vadd.f32 %v272, %v622
        %v624 = vpop.f32.mrf.mxu0
        %625 = vmatprep.mubr.f32.mxu0 0.0
        %626 = vmatmul.mubr.f32.gmra.mxu0 %v330
        %v627 = vpop.f32.mrf.mxu0
        %v628 = vadd.f32 %v272, %v627
        %v629 = vpop.f32.mrf.mxu0
        %630 = vmatprep.mubr.f32.mxu0 0.0
        %631 = vmatmul.mubr.f32.gmra.mxu0 %v333
        %v632 = vpop.f32.mrf.mxu0
        %v633 = vadd.f32 %v272, %v632
        %v634 = vpop.f32.mrf.mxu0
        %635 = vmatprep.mubr.f32.mxu0 0.0
        %636 = vmatmul.mubr.f32.gmra.mxu0 %v336
        %v637 = vpop.f32.mrf.mxu0
        %v638 = vadd.f32 %v272, %v637
        %v639 = vpop.f32.mrf.mxu0
        %640 = vmatprep.mubr.f32.mxu0 0.0
        %641 = vmatmul.mubr.f32.gmra.mxu0 %v339
        %v642 = vpop.f32.mrf.mxu0
        %v643 = vadd.f32 %v272, %v642
        %v644 = vpop.f32.mrf.mxu0
        %645 = vmatprep.mubr.f32.mxu0 0.0
        %646 = vmatmul.mubr.f32.gmra.mxu0 %v342
        %v647 = vpop.f32.mrf.mxu0
        %v648 = vadd.f32 %v272, %v647
        %v649 = vpop.f32.mrf.mxu0
        %650 = vmatprep.mubr.f32.mxu0 0.0
        %651 = vmatmul.mubr.f32.gmra.mxu0 %v345
        %v652 = vpop.f32.mrf.mxu0
        %v653 = vadd.f32 %v272, %v652
        %v654 = vpop.f32.mrf.mxu0
        %655 = vmatprep.mubr.f32.mxu0 0.0
        %656 = vmatmul.mubr.f32.gmra.mxu0 %v348
        %v657 = vpop.f32.mrf.mxu0
        %v658 = vadd.f32 %v272, %v657
        %v659 = vpop.f32.mrf.mxu0
        %660 = vmatprep.mubr.f32.mxu0 0.0
        %661 = vmatmul.mubr.f32.gmra.mxu0 %v351
        %v662 = vpop.f32.mrf.mxu0
        %v663 = vadd.f32 %v272, %v662
        %v664 = vpop.f32.mrf.mxu0
        %665 = vmatprep.mubr.f32.mxu0 0.0
        %666 = vmatmul.mubr.f32.gmra.mxu0 %v354
        %v667 = vpop.f32.mrf.mxu0
        %v668 = vadd.f32 %v272, %v667
        %v669 = vpop.f32.mrf.mxu0
        %670 = vmatprep.mubr.f32.mxu0 0.0
        %671 = vmatmul.mubr.f32.gmra.mxu0 %v357
        %v672 = vpop.f32.mrf.mxu0
        %v673 = vadd.f32 %v272, %v672
        %v674 = vpop.f32.mrf.mxu0
        %675 = vmatprep.mubr.f32.mxu0 0.0
        %676 = vmatmul.mubr.f32.gmra.mxu0 %v360
        %v677 = vpop.f32.mrf.mxu0
        %v678 = vadd.f32 %v272, %v677
        %v679 = vpop.f32.mrf.mxu0
        %680 = vmatprep.mubr.f32.mxu0 0.0
        %681 = vmatmul.mubr.f32.gmra.mxu0 %v363
        %v682 = vpop.f32.mrf.mxu0
        %v683 = vadd.f32 %v272, %v682
        %v684 = vpop.f32.mrf.mxu0
        %685 = vmatprep.mubr.f32.mxu0 0.0
        %686 = vmatmul.mubr.f32.gmra.mxu0 %v366
        %v687 = vpop.f32.mrf.mxu0
        %v688 = vadd.f32 %v272, %v687
        %v689 = vpop.f32.mrf.mxu0
        %690 = vmatprep.mubr.f32.mxu0 0.0
        %691 = vmatmul.mubr.f32.gmra.mxu0 %v369
        %v692 = vpop.f32.mrf.mxu0
        %v693 = vadd.f32 %v272, %v692
        %v694 = vpop.f32.mrf.mxu0
        %695 = vmatprep.mubr.f32.mxu0 0.0
        %696 = vmatmul.mubr.f32.gmra.mxu0 %v372
        %v697 = vpop.f32.mrf.mxu0
        %v698 = vadd.f32 %v272, %v697
        %v699 = vpop.f32.mrf.mxu0
        %700 = vmatprep.mubr.f32.mxu0 0.0
        %701 = vmatmul.mubr.f32.gmra.mxu0 %v375
        %v702 = vpop.f32.mrf.mxu0
        %v703 = vadd.f32 %v272, %v702
        %v704 = vpop.f32.mrf.mxu0
        %705 = vmatprep.mubr.f32.mxu0 0.0
        %706 = vmatmul.mubr.f32.gmra.mxu0 %v378
        %v707 = vpop.f32.mrf.mxu0
        %v708 = vadd.f32 %v272, %v707
        %v709 = vpop.f32.mrf.mxu0
        %710 = vmatprep.mubr.f32.mxu0 0.0
        %711 = vmatmul.mubr.f32.gmra.mxu0 %v381
        %v712 = vpop.f32.mrf.mxu0
        %v713 = vadd.f32 %v272, %v712
        %v714 = vpop.f32.mrf.mxu0
        %715 = vmatprep.mubr.f32.mxu0 0.0
        %716 = vmatmul.mubr.f32.gmra.mxu0 %v384
        %v717 = vpop.f32.mrf.mxu0
        %v718 = vadd.f32 %v272, %v717
        %v719 = vpop.f32.mrf.mxu0
        %720 = vmatprep.mubr.f32.mxu0 0.0
        %721 = vmatmul.mubr.f32.gmra.mxu0 %v387
        %v722 = vpop.f32.mrf.mxu0
        %v723 = vadd.f32 %v272, %v722
        %v724 = vpop.f32.mrf.mxu0
        %725 = vmatprep.mubr.f32.mxu0 0.0
        %726 = vmatmul.mubr.f32.gmra.mxu0 %v390
        %v727 = vpop.f32.mrf.mxu0
        %v728 = vadd.f32 %v272, %v727
        %v729 = vpop.f32.mrf.mxu0
        %730 = vmatprep.mubr.f32.mxu0 0.0
        %731 = vmatmul.mubr.f32.gmra.mxu0 %v393
        %v732 = vpop.f32.mrf.mxu0
        %v733 = vadd.f32 %v272, %v732
        %v734 = vpop.f32.mrf.mxu0
        %735 = vmatprep.mubr.f32.mxu0 0.0
        %736 = vmatmul.mubr.f32.gmra.mxu0 %v396
        %v737 = vpop.f32.mrf.mxu0
        %v738 = vadd.f32 %v272, %v737
        %v739 = vpop.f32.mrf.mxu0
        %740 = vmatprep.mubr.f32.mxu0 0.0
        %741 = vmatmul.mubr.f32.gmra.mxu0 %v399
        %v742 = vpop.f32.mrf.mxu0
        %v743 = vadd.f32 %v272, %v742
        %v744 = vpop.f32.mrf.mxu0
        %745 = vmatprep.mubr.f32.mxu0 0.0
        %746 = vmatmul.mubr.f32.gmra.mxu0 %v402
        %v747 = vpop.f32.mrf.mxu0
        %v748 = vadd.f32 %v272, %v747
        %v749 = vpop.f32.mrf.mxu0
        %750 = vmatprep.mubr.f32.mxu0 0.0
        %751 = vmatmul.mubr.f32.gmra.mxu0 %v405
        %v752 = vpop.f32.mrf.mxu0
        %v753 = vadd.f32 %v272, %v752
        %v754 = vpop.f32.mrf.mxu0
        %755 = vmatprep.mubr.f32.mxu0 0.0
        %756 = vmatmul.mubr.f32.gmra.mxu0 %v408
        %v757 = vpop.f32.mrf.mxu0
        %v758 = vadd.f32 %v272, %v757
        %v759 = vpop.f32.mrf.mxu0
        %760 = vmatprep.mubr.f32.mxu0 0.0
        %761 = vmatmul.mubr.f32.gmra.mxu0 %v411
        %v762 = vpop.f32.mrf.mxu0
        %v763 = vadd.f32 %v272, %v762
        %v764 = vpop.f32.mrf.mxu0
        %765 = vmatprep.mubr.f32.mxu0 0.0
        %766 = vmatmul.mubr.f32.gmra.mxu0 %v414
        %v767 = vpop.f32.mrf.mxu0
        %v768 = vadd.f32 %v272, %v767
        %v769 = vpop.f32.mrf.mxu0
        %770 = vmatprep.mubr.f32.mxu0 0.0
        %771 = vmatmul.mubr.f32.gmra.mxu0 %v417
        %v772 = vpop.f32.mrf.mxu0
        %v773 = vadd.f32 %v272, %v772
        %v774 = vpop.f32.mrf.mxu0
        %775 = vmatprep.mubr.f32.mxu0 0.0
        %776 = vmatmul.mubr.f32.gmra.mxu0 %v420
        %v777 = vpop.f32.mrf.mxu0
        %v778 = vadd.f32 %v272, %v777
        %v779 = vpop.f32.mrf.mxu0
        %780 = vmatprep.mubr.f32.mxu0 0.0
        %781 = vmatmul.mubr.f32.gmra.mxu0 %v423
        %v782 = vpop.f32.mrf.mxu0
        %v783 = vadd.f32 %v272, %v782
        %v784 = vpop.f32.mrf.mxu0
        %785 = vmatprep.mubr.f32.mxu0 0.0
        %786 = vmatmul.mubr.f32.gmra.mxu0 %v426
        %v787 = vpop.f32.mrf.mxu0
        %v788 = vadd.f32 %v272, %v787
        %v789 = vpop.f32.mrf.mxu0
        %790 = vmatprep.mubr.f32.mxu0 0.0
        %791 = vmatmul.mubr.f32.gmra.mxu0 %v429
        %v792 = vpop.f32.mrf.mxu0
        %v793 = vadd.f32 %v272, %v792
        %v794 = vpop.f32.mrf.mxu0
        %795 = vmatprep.mubr.f32.mxu0 0.0
        %796 = vmatmul.mubr.f32.gmra.mxu0 %v432
        %v797 = vpop.f32.mrf.mxu0
        %v798 = vadd.f32 %v272, %v797
        %v799 = vpop.f32.mrf.mxu0
        %800 = vmatprep.mubr.f32.mxu0 0.0
        %801 = vmatmul.mubr.f32.gmra.mxu0 %v435
        %v802 = vpop.f32.mrf.mxu0
        %v803 = vadd.f32 %v272, %v802
        %v804 = vpop.f32.mrf.mxu0
        %805 = vmatprep.mubr.f32.mxu0 0.0
        %806 = vmatmul.mubr.f32.gmra.mxu0 %v438
        %v807 = vpop.f32.mrf.mxu0
        %v808 = vadd.f32 %v272, %v807
        %v809 = vpop.f32.mrf.mxu0
        %810 = vmatprep.mubr.f32.mxu0 0.0
        %811 = vmatmul.mubr.f32.gmra.mxu0 %v441
        %v812 = vpop.f32.mrf.mxu0
        %v813 = vadd.f32 %v272, %v812
        %v814 = vpop.f32.mrf.mxu0
        %815 = vmatprep.mubr.f32.mxu0 0.0
        %816 = vmatmul.mubr.f32.gmra.mxu0 %v444
        %v817 = vpop.f32.mrf.mxu0
        %v818 = vadd.f32 %v272, %v817
        %v819 = vpop.f32.mrf.mxu0
        %820 = vmatprep.mubr.f32.mxu0 0.0
        %821 = vmatmul.mubr.f32.gmra.mxu0 %v447
        %v822 = vpop.f32.mrf.mxu0
        %v823 = vadd.f32 %v272, %v822
        %v824 = vpop.f32.mrf.mxu0
        %825 = vmatprep.mubr.f32.mxu0 0.0
        %826 = vmatmul.mubr.f32.gmra.mxu0 %v450
        %v827 = vpop.f32.mrf.mxu0
        %v828 = vadd.f32 %v272, %v827
        %v829 = vpop.f32.mrf.mxu0
        %830 = vmatprep.mubr.f32.mxu0 0.0
        %831 = vmatmul.mubr.f32.gmra.mxu0 %v453
        %v832 = vpop.f32.mrf.mxu0
        %v833 = vadd.f32 %v272, %v832
        %v834 = vpop.f32.mrf.mxu0
        %835 = vmatprep.mubr.f32.mxu0 0.0
        %836 = vmatmul.mubr.f32.gmra.mxu0 %v456
        %v837 = vpop.f32.mrf.mxu0
        %v838 = vadd.f32 %v272, %v837
        %v839 = vpop.f32.mrf.mxu0
        %840 = vmatprep.mubr.f32.mxu0 0.0
        %841 = vmatmul.mubr.f32.gmra.mxu0 %v459
        %v842 = vpop.f32.mrf.mxu0
        %v843 = vadd.f32 %v272, %v842
        %v844 = vpop.f32.mrf.mxu0
        %845 = vmatprep.mubr.f32.mxu0 0.0
        %846 = vmatmul.mubr.f32.gmra.mxu0 %v462
        %v847 = vpop.f32.mrf.mxu0
        %v848 = vadd.f32 %v272, %v847
        %v849 = vpop.f32.mrf.mxu0
        %850 = vmatprep.mubr.f32.mxu0 0.0
        %851 = vmatmul.mubr.f32.gmra.mxu0 %v465
        %v852 = vpop.f32.mrf.mxu0
        %v853 = vadd.f32 %v272, %v852
        %v854 = vpop.f32.mrf.mxu0
        %855 = vdwg.mxu0
        %vm856 = vcmask 23552
        %857 = vst.msk [vmem:[%s172] sm:$0xff] %vm856, %v538
        %858 = vst.msk [vmem:[%s172 + $0x8] sm:$0xff] %vm856, %v543
        %859 = vst.msk [vmem:[%s172 + $0x10] sm:$0xff] %vm856, %v548
        %860 = vst.msk [vmem:[%s172 + $0x18] sm:$0xff] %vm856, %v553
        %861 = vst.msk [vmem:[%s172 + $0x20] sm:$0xff] %vm856, %v558
        %862 = vst.msk [vmem:[%s172 + $0x28] sm:$0xff] %vm856, %v563
        %863 = vst.msk [vmem:[%s172 + $0x30] sm:$0xff] %vm856, %v568
        %864 = vst.msk [vmem:[%s172 + $0x38] sm:$0xff] %vm856, %v573
        %865 = vst.msk [vmem:[%s172 + $0x40] sm:$0xff] %vm856, %v578
        %866 = vst.msk [vmem:[%s172 + $0x48] sm:$0xff] %vm856, %v583
        %867 = vst.msk [vmem:[%s172 + $0x50] sm:$0xff] %vm856, %v588
        %868 = vst.msk [vmem:[%s172 + $0x58] sm:$0xff] %vm856, %v593
        %869 = vst.msk [vmem:[%s172 + $0x60] sm:$0xff] %vm856, %v598
        %870 = vst.msk [vmem:[%s172 + $0x68] sm:$0xff] %vm856, %v603
        %871 = vst.msk [vmem:[%s172 + $0x70] sm:$0xff] %vm856, %v608
        %872 = vst.msk [vmem:[%s172 + $0x78] sm:$0xff] %vm856, %v613
        %873 = vst.msk [vmem:[%s172 + $0x80] sm:$0xff] %vm856, %v618
        %874 = vst.msk [vmem:[%s172 + $0x88] sm:$0xff] %vm856, %v623
        %875 = vst.msk [vmem:[%s172 + $0x90] sm:$0xff] %vm856, %v628
        %876 = vst.msk [vmem:[%s172 + $0x98] sm:$0xff] %vm856, %v633
        %877 = vst.msk [vmem:[%s172 + $0xa0] sm:$0xff] %vm856, %v638
        %878 = vst.msk [vmem:[%s172 + $0xa8] sm:$0xff] %vm856, %v643
        %879 = vst.msk [vmem:[%s172 + $0xb0] sm:$0xff] %vm856, %v648
        %880 = vst.msk [vmem:[%s172 + $0xb8] sm:$0xff] %vm856, %v653
        %881 = vst.msk [vmem:[%s172 + $0xc0] sm:$0xff] %vm856, %v658
        %882 = vst.msk [vmem:[%s172 + $0xc8] sm:$0xff] %vm856, %v663
        %883 = vst.msk [vmem:[%s172 + $0xd0] sm:$0xff] %vm856, %v668
        %884 = vst.msk [vmem:[%s172 + $0xd8] sm:$0xff] %vm856, %v673
        %885 = vst.msk [vmem:[%s172 + $0xe0] sm:$0xff] %vm856, %v678
        %886 = vst.msk [vmem:[%s172 + $0xe8] sm:$0xff] %vm856, %v683
        %887 = vst.msk [vmem:[%s172 + $0xf0] sm:$0xff] %vm856, %v688
        %888 = vst.msk [vmem:[%s172 + $0xf8] sm:$0xff] %vm856, %v693
        %889 = vst.msk [vmem:[%s172 + $0x100] sm:$0xff] %vm856, %v698
        %890 = vst.msk [vmem:[%s172 + $0x108] sm:$0xff] %vm856, %v703
        %891 = vst.msk [vmem:[%s172 + $0x110] sm:$0xff] %vm856, %v708
        %892 = vst.msk [vmem:[%s172 + $0x118] sm:$0xff] %vm856, %v713
        %893 = vst.msk [vmem:[%s172 + $0x120] sm:$0xff] %vm856, %v718
        %894 = vst.msk [vmem:[%s172 + $0x128] sm:$0xff] %vm856, %v723
        %895 = vst.msk [vmem:[%s172 + $0x130] sm:$0xff] %vm856, %v728
        %896 = vst.msk [vmem:[%s172 + $0x138] sm:$0xff] %vm856, %v733
        %897 = vst.msk [vmem:[%s172 + $0x140] sm:$0xff] %vm856, %v738
        %898 = vst.msk [vmem:[%s172 + $0x148] sm:$0xff] %vm856, %v743
        %899 = vst.msk [vmem:[%s172 + $0x150] sm:$0xff] %vm856, %v748
        %900 = vst.msk [vmem:[%s172 + $0x158] sm:$0xff] %vm856, %v753
        %901 = vst.msk [vmem:[%s172 + $0x160] sm:$0xff] %vm856, %v758
        %902 = vst.msk [vmem:[%s172 + $0x168] sm:$0xff] %vm856, %v763
        %903 = vst.msk [vmem:[%s172 + $0x170] sm:$0xff] %vm856, %v768
        %904 = vst.msk [vmem:[%s172 + $0x178] sm:$0xff] %vm856, %v773
        %905 = vst.msk [vmem:[%s172 + $0x180] sm:$0xff] %vm856, %v778
        %906 = vst.msk [vmem:[%s172 + $0x188] sm:$0xff] %vm856, %v783
        %907 = vst.msk [vmem:[%s172 + $0x190] sm:$0xff] %vm856, %v788
        %908 = vst.msk [vmem:[%s172 + $0x198] sm:$0xff] %vm856, %v793
        %909 = vst.msk [vmem:[%s172 + $0x1a0] sm:$0xff] %vm856, %v798
        %910 = vst.msk [vmem:[%s172 + $0x1a8] sm:$0xff] %vm856, %v803
        %911 = vst.msk [vmem:[%s172 + $0x1b0] sm:$0xff] %vm856, %v808
        %912 = vst.msk [vmem:[%s172 + $0x1b8] sm:$0xff] %vm856, %v813
        %913 = vst.msk [vmem:[%s172 + $0x1c0] sm:$0xff] %vm856, %v818
        %914 = vst.msk [vmem:[%s172 + $0x1c8] sm:$0xff] %vm856, %v823
        %915 = vst.msk [vmem:[%s172 + $0x1d0] sm:$0xff] %vm856, %v828
        %916 = vst.msk [vmem:[%s172 + $0x1d8] sm:$0xff] %vm856, %v833
        %917 = vst.msk [vmem:[%s172 + $0x1e0] sm:$0xff] %vm856, %v838
        %918 = vst.msk [vmem:[%s172 + $0x1e8] sm:$0xff] %vm856, %v843
        %919 = vst.msk [vmem:[%s172 + $0x1f0] sm:$0xff] %vm856, %v848
        %920 = vst.msk [vmem:[%s172 + $0x1f8] sm:$0xff] %vm856, %v853
        %s921 = sand.u32 %s90, 1
        %s922 = sand.u32 %s90, 1
        %s923 = smul.addr %s922, 512
        %s924 = scalar_lea.vmem [#allocation2], %s923
        // Predicated region
        $region33: #{tpu_custom_call.1} parent=31 // pred_check
          %p925 = pneg %p100
        $region34: #{tpu_custom_call.1} parent=31 // pred_check_branch
          %927 = sbr.rel (%p925) target = $region36
        $region35: #{tpu_custom_call.1} parent=31 // pred_region
          %s928 = smul.u32 64, %s14
          %s929 = ssub.s32 125, %s928
          %p930 = scmp.lt.s32.totalorder %s929, 64
          %s931 = scalar_select %p930, %s929, 64
          %s932 = smul.u32 128, %s931
          %p933 = scmp.ne.s32.totalorder 0, %s932
          %s934 = smul.addr %s928, 8
          %s935 = scalar_lea.vmem %s3, %s934
          // Predicated region
          $region37: #{tpu_custom_call.1} parent=35 // pred_check
            %p936 = pneg %p933
          $region38: #{tpu_custom_call.1} parent=35 // pred_check_branch
            %938 = sbr.rel (%p936) target = $region40
          $region39: #{tpu_custom_call.1} parent=35 // pred_region
            // Predicated region
            $region41: #{tpu_custom_call.1} parent=39 // pred_check
              _
            $region42: #{tpu_custom_call.1} parent=39 // pred_check_branch
              %940 = sbr.rel (0) target = $region44
            $region43: #{tpu_custom_call.1} parent=39 // pred_region
              // Predicated region
              $region63: #{tpu_custom_call.1} parent=43 // pred_check
                _
              $region64: #{tpu_custom_call.1} parent=43 // pred_check_branch
                %1116 = sbr.rel (0) target = $region66
              $region65: #{tpu_custom_call.1} parent=43 // pred_region
                %s1117 = sshrl.u32 %s931, 6
                // While loop
                $region67: #{tpu_custom_call.1} parent=65 // loop_pre_header
                  _
                $region68: #{tpu_custom_call.1} parent=65 // loop_header
                  %s1119 = sphi 0, %s1121
                  %p1120 = scmp.ge.s32.totalorder %s1119, %s1117
                  %s1124 = sphi 0, %s1257
                  %s1125 = sphi %s924, %s1260
                  %s1126 = sphi %s935, %s1261
                $region69: #{tpu_custom_call.1} parent=65 // loop_header_branch
                  %1123 = sbr.rel (%p1120) target = $region73
                $region70: #{tpu_custom_call.1} parent=65 // loop_body
                  %v1127 = vld [vmem:[%s1125] sm:$0xff]
                  %1128 = vst [vmem:[%s1126] sm:$0xff] %v1127
                  %v1129 = vld [vmem:[%s1125 + $0x8] sm:$0xff]
                  %1130 = vst [vmem:[%s1126 + $0x8] sm:$0xff] %v1129
                  %v1131 = vld [vmem:[%s1125 + $0x10] sm:$0xff]
                  %1132 = vst [vmem:[%s1126 + $0x10] sm:$0xff] %v1131
                  %v1133 = vld [vmem:[%s1125 + $0x18] sm:$0xff]
                  %1134 = vst [vmem:[%s1126 + $0x18] sm:$0xff] %v1133
                  %v1135 = vld [vmem:[%s1125 + $0x20] sm:$0xff]
                  %1136 = vst [vmem:[%s1126 + $0x20] sm:$0xff] %v1135
                  %v1137 = vld [vmem:[%s1125 + $0x28] sm:$0xff]
                  %1138 = vst [vmem:[%s1126 + $0x28] sm:$0xff] %v1137
                  %v1139 = vld [vmem:[%s1125 + $0x30] sm:$0xff]
                  %1140 = vst [vmem:[%s1126 + $0x30] sm:$0xff] %v1139
                  %v1141 = vld [vmem:[%s1125 + $0x38] sm:$0xff]
                  %1142 = vst [vmem:[%s1126 + $0x38] sm:$0xff] %v1141
                  %v1143 = vld [vmem:[%s1125 + $0x40] sm:$0xff]
                  %1144 = vst [vmem:[%s1126 + $0x40] sm:$0xff] %v1143
                  %v1145 = vld [vmem:[%s1125 + $0x48] sm:$0xff]
                  %1146 = vst [vmem:[%s1126 + $0x48] sm:$0xff] %v1145
                  %v1147 = vld [vmem:[%s1125 + $0x50] sm:$0xff]
                  %1148 = vst [vmem:[%s1126 + $0x50] sm:$0xff] %v1147
                  %v1149 = vld [vmem:[%s1125 + $0x58] sm:$0xff]
                  %1150 = vst [vmem:[%s1126 + $0x58] sm:$0xff] %v1149
                  %v1151 = vld [vmem:[%s1125 + $0x60] sm:$0xff]
                  %1152 = vst [vmem:[%s1126 + $0x60] sm:$0xff] %v1151
                  %v1153 = vld [vmem:[%s1125 + $0x68] sm:$0xff]
                  %1154 = vst [vmem:[%s1126 + $0x68] sm:$0xff] %v1153
                  %v1155 = vld [vmem:[%s1125 + $0x70] sm:$0xff]
                  %1156 = vst [vmem:[%s1126 + $0x70] sm:$0xff] %v1155
                  %v1157 = vld [vmem:[%s1125 + $0x78] sm:$0xff]
                  %1158 = vst [vmem:[%s1126 + $0x78] sm:$0xff] %v1157
                  %v1159 = vld [vmem:[%s1125 + $0x80] sm:$0xff]
                  %1160 = vst [vmem:[%s1126 + $0x80] sm:$0xff] %v1159
                  %v1161 = vld [vmem:[%s1125 + $0x88] sm:$0xff]
                  %1162 = vst [vmem:[%s1126 + $0x88] sm:$0xff] %v1161
                  %v1163 = vld [vmem:[%s1125 + $0x90] sm:$0xff]
                  %1164 = vst [vmem:[%s1126 + $0x90] sm:$0xff] %v1163
                  %v1165 = vld [vmem:[%s1125 + $0x98] sm:$0xff]
                  %1166 = vst [vmem:[%s1126 + $0x98] sm:$0xff] %v1165
                  %v1167 = vld [vmem:[%s1125 + $0xa0] sm:$0xff]
                  %1168 = vst [vmem:[%s1126 + $0xa0] sm:$0xff] %v1167
                  %v1169 = vld [vmem:[%s1125 + $0xa8] sm:$0xff]
                  %1170 = vst [vmem:[%s1126 + $0xa8] sm:$0xff] %v1169
                  %v1171 = vld [vmem:[%s1125 + $0xb0] sm:$0xff]
                  %1172 = vst [vmem:[%s1126 + $0xb0] sm:$0xff] %v1171
                  %v1173 = vld [vmem:[%s1125 + $0xb8] sm:$0xff]
                  %1174 = vst [vmem:[%s1126 + $0xb8] sm:$0xff] %v1173
                  %v1175 = vld [vmem:[%s1125 + $0xc0] sm:$0xff]
                  %1176 = vst [vmem:[%s1126 + $0xc0] sm:$0xff] %v1175
                  %v1177 = vld [vmem:[%s1125 + $0xc8] sm:$0xff]
                  %1178 = vst [vmem:[%s1126 + $0xc8] sm:$0xff] %v1177
                  %v1179 = vld [vmem:[%s1125 + $0xd0] sm:$0xff]
                  %1180 = vst [vmem:[%s1126 + $0xd0] sm:$0xff] %v1179
                  %v1181 = vld [vmem:[%s1125 + $0xd8] sm:$0xff]
                  %1182 = vst [vmem:[%s1126 + $0xd8] sm:$0xff] %v1181
                  %v1183 = vld [vmem:[%s1125 + $0xe0] sm:$0xff]
                  %1184 = vst [vmem:[%s1126 + $0xe0] sm:$0xff] %v1183
                  %v1185 = vld [vmem:[%s1125 + $0xe8] sm:$0xff]
                  %1186 = vst [vmem:[%s1126 + $0xe8] sm:$0xff] %v1185
                  %v1187 = vld [vmem:[%s1125 + $0xf0] sm:$0xff]
                  %1188 = vst [vmem:[%s1126 + $0xf0] sm:$0xff] %v1187
                  %v1189 = vld [vmem:[%s1125 + $0xf8] sm:$0xff]
                  %1190 = vst [vmem:[%s1126 + $0xf8] sm:$0xff] %v1189
                  %v1191 = vld [vmem:[%s1125 + $0x100] sm:$0xff]
                  %1192 = vst [vmem:[%s1126 + $0x100] sm:$0xff] %v1191
                  %v1193 = vld [vmem:[%s1125 + $0x108] sm:$0xff]
                  %1194 = vst [vmem:[%s1126 + $0x108] sm:$0xff] %v1193
                  %v1195 = vld [vmem:[%s1125 + $0x110] sm:$0xff]
                  %1196 = vst [vmem:[%s1126 + $0x110] sm:$0xff] %v1195
                  %v1197 = vld [vmem:[%s1125 + $0x118] sm:$0xff]
                  %1198 = vst [vmem:[%s1126 + $0x118] sm:$0xff] %v1197
                  %v1199 = vld [vmem:[%s1125 + $0x120] sm:$0xff]
                  %1200 = vst [vmem:[%s1126 + $0x120] sm:$0xff] %v1199
                  %v1201 = vld [vmem:[%s1125 + $0x128] sm:$0xff]
                  %1202 = vst [vmem:[%s1126 + $0x128] sm:$0xff] %v1201
                  %v1203 = vld [vmem:[%s1125 + $0x130] sm:$0xff]
                  %1204 = vst [vmem:[%s1126 + $0x130] sm:$0xff] %v1203
                  %v1205 = vld [vmem:[%s1125 + $0x138] sm:$0xff]
                  %1206 = vst [vmem:[%s1126 + $0x138] sm:$0xff] %v1205
                  %v1207 = vld [vmem:[%s1125 + $0x140] sm:$0xff]
                  %1208 = vst [vmem:[%s1126 + $0x140] sm:$0xff] %v1207
                  %v1209 = vld [vmem:[%s1125 + $0x148] sm:$0xff]
                  %1210 = vst [vmem:[%s1126 + $0x148] sm:$0xff] %v1209
                  %v1211 = vld [vmem:[%s1125 + $0x150] sm:$0xff]
                  %1212 = vst [vmem:[%s1126 + $0x150] sm:$0xff] %v1211
                  %v1213 = vld [vmem:[%s1125 + $0x158] sm:$0xff]
                  %1214 = vst [vmem:[%s1126 + $0x158] sm:$0xff] %v1213
                  %v1215 = vld [vmem:[%s1125 + $0x160] sm:$0xff]
                  %1216 = vst [vmem:[%s1126 + $0x160] sm:$0xff] %v1215
                  %v1217 = vld [vmem:[%s1125 + $0x168] sm:$0xff]
                  %1218 = vst [vmem:[%s1126 + $0x168] sm:$0xff] %v1217
                  %v1219 = vld [vmem:[%s1125 + $0x170] sm:$0xff]
                  %1220 = vst [vmem:[%s1126 + $0x170] sm:$0xff] %v1219
                  %v1221 = vld [vmem:[%s1125 + $0x178] sm:$0xff]
                  %1222 = vst [vmem:[%s1126 + $0x178] sm:$0xff] %v1221
                  %v1223 = vld [vmem:[%s1125 + $0x180] sm:$0xff]
                  %1224 = vst [vmem:[%s1126 + $0x180] sm:$0xff] %v1223
                  %v1225 = vld [vmem:[%s1125 + $0x188] sm:$0xff]
                  %1226 = vst [vmem:[%s1126 + $0x188] sm:$0xff] %v1225
                  %v1227 = vld [vmem:[%s1125 + $0x190] sm:$0xff]
                  %1228 = vst [vmem:[%s1126 + $0x190] sm:$0xff] %v1227
                  %v1229 = vld [vmem:[%s1125 + $0x198] sm:$0xff]
                  %1230 = vst [vmem:[%s1126 + $0x198] sm:$0xff] %v1229
                  %v1231 = vld [vmem:[%s1125 + $0x1a0] sm:$0xff]
                  %1232 = vst [vmem:[%s1126 + $0x1a0] sm:$0xff] %v1231
                  %v1233 = vld [vmem:[%s1125 + $0x1a8] sm:$0xff]
                  %1234 = vst [vmem:[%s1126 + $0x1a8] sm:$0xff] %v1233
                  %v1235 = vld [vmem:[%s1125 + $0x1b0] sm:$0xff]
                  %1236 = vst [vmem:[%s1126 + $0x1b0] sm:$0xff] %v1235
                  %v1237 = vld [vmem:[%s1125 + $0x1b8] sm:$0xff]
                  %1238 = vst [vmem:[%s1126 + $0x1b8] sm:$0xff] %v1237
                  %v1239 = vld [vmem:[%s1125 + $0x1c0] sm:$0xff]
                  %1240 = vst [vmem:[%s1126 + $0x1c0] sm:$0xff] %v1239
                  %v1241 = vld [vmem:[%s1125 + $0x1c8] sm:$0xff]
                  %1242 = vst [vmem:[%s1126 + $0x1c8] sm:$0xff] %v1241
                  %v1243 = vld [vmem:[%s1125 + $0x1d0] sm:$0xff]
                  %1244 = vst [vmem:[%s1126 + $0x1d0] sm:$0xff] %v1243
                  %v1245 = vld [vmem:[%s1125 + $0x1d8] sm:$0xff]
                  %1246 = vst [vmem:[%s1126 + $0x1d8] sm:$0xff] %v1245
                  %v1247 = vld [vmem:[%s1125 + $0x1e0] sm:$0xff]
                  %1248 = vst [vmem:[%s1126 + $0x1e0] sm:$0xff] %v1247
                  %v1249 = vld [vmem:[%s1125 + $0x1e8] sm:$0xff]
                  %1250 = vst [vmem:[%s1126 + $0x1e8] sm:$0xff] %v1249
                  %v1251 = vld [vmem:[%s1125 + $0x1f0] sm:$0xff]
                  %1252 = vst [vmem:[%s1126 + $0x1f0] sm:$0xff] %v1251
                  %v1253 = vld [vmem:[%s1125 + $0x1f8] sm:$0xff]
                  %1254 = vst [vmem:[%s1126 + $0x1f8] sm:$0xff] %v1253
                  %s1255 = sadd.s32 1, %s1124
                  %p1256 = scmp.ge.s32.totalorder %s1255, %s1117
                  %s1257 = scalar_select %p1256, 0, %s1255
                  %s1258 = smul.u32 %s1257, 512
                  %s1259 = smul.u32 %s1257, 512
                  %s1260 = scalar_lea.vmem %s924, %s1258 [#allocation2]
                  %s1261 = scalar_lea.vmem %s935, %s1259
                $region71: #{tpu_custom_call.1} parent=65 // loop_footer
                  %s1121 = sadd.s32 %s1119, 1
                $region72: #{tpu_custom_call.1} parent=65 // loop_footer_branch
                  %1118 = sbr.rel target = $region68
                $region73: #{tpu_custom_call.1} parent=65 // loop_exit
                  _
                %s1262 = sshrl.u32 %s931, 6
                %s1263 = sand.u32 %s931, 63
                %s1264 = smul.u32 %s1262, 64
                %s1265 = smul.u32 8, %s1264
                %s1266 = scalar_lea.vmem %s924, %s1265 [#allocation2]
                %s1267 = smul.u32 8, %s1264
                %s1268 = scalar_lea.vmem %s935, %s1267
                // While loop
                $region74: #{tpu_custom_call.1} parent=65 // loop_pre_header
                  _
                $region75: #{tpu_custom_call.1} parent=65 // loop_header
                  %s1270 = sphi 0, %s1272
                  %p1271 = scmp.ge.s32.totalorder %s1270, %s1263
                  %s1275 = sphi 0, %s1282
                  %s1276 = sphi %s1266, %s1285
                  %s1277 = sphi %s1268, %s1286
                $region76: #{tpu_custom_call.1} parent=65 // loop_header_branch
                  %1274 = sbr.rel (%p1271) target = $region80
                $region77: #{tpu_custom_call.1} parent=65 // loop_body
                  %v1278 = vld [vmem:[%s1276] sm:$0xff]
                  %1279 = vst [vmem:[%s1277] sm:$0xff] %v1278
                  %s1280 = sadd.s32 1, %s1275
                  %p1281 = scmp.ge.s32.totalorder %s1280, %s1263
                  %s1282 = scalar_select %p1281, 0, %s1280
                  %s1283 = smul.u32 %s1282, 8
                  %s1284 = smul.u32 %s1282, 8
                  %s1285 = scalar_lea.vmem %s1266, %s1283 [#allocation2]
                  %s1286 = scalar_lea.vmem %s1268, %s1284
                $region78: #{tpu_custom_call.1} parent=65 // loop_footer
                  %s1272 = sadd.s32 %s1270, 1
                $region79: #{tpu_custom_call.1} parent=65 // loop_footer_branch
                  %1269 = sbr.rel target = $region75
                $region80: #{tpu_custom_call.1} parent=65 // loop_exit
                  _
              $region66: #{tpu_custom_call.1} parent=43 // pred_fallthru
                _
              // Predicated region
              $region81: #{tpu_custom_call.1} parent=43 // pred_check
                _
              $region82: #{tpu_custom_call.1} parent=43 // pred_check_branch
                %1288 = sbr.rel target = $region84
              $region83: #{tpu_custom_call.1} parent=43 // pred_region
                _
              $region84: #{tpu_custom_call.1} parent=43 // pred_fallthru
                _
            $region44: #{tpu_custom_call.1} parent=39 // pred_fallthru
              _
            // Predicated region
            $region45: #{tpu_custom_call.1} parent=39 // pred_check
              _
            $region46: #{tpu_custom_call.1} parent=39 // pred_check_branch
              %942 = sbr.rel target = $region48
            $region47: #{tpu_custom_call.1} parent=39 // pred_region
              %s944 = ssub.s32 256, 1
              %s945 = sshrl.u32 %s931, 6
              // While loop
              $region49: #{tpu_custom_call.1} parent=47 // loop_pre_header
                _
              $region50: #{tpu_custom_call.1} parent=47 // loop_header
                %s947 = sphi 0, %s949
                %p948 = scmp.ge.s32.totalorder %s947, %s945
                %s952 = sphi 0, %s1085
                %s953 = sphi %s924, %s1088
                %s954 = sphi %s935, %s1089
              $region51: #{tpu_custom_call.1} parent=47 // loop_header_branch
                %951 = sbr.rel (%p948) target = $region55
              $region52: #{tpu_custom_call.1} parent=47 // loop_body
                %v955 = vld [vmem:[%s953] sm:%s944]
                %956 = vst [vmem:[%s954] sm:%s944] %v955
                %v957 = vld [vmem:[%s953 + $0x8] sm:%s944]
                %958 = vst [vmem:[%s954 + $0x8] sm:%s944] %v957
                %v959 = vld [vmem:[%s953 + $0x10] sm:%s944]
                %960 = vst [vmem:[%s954 + $0x10] sm:%s944] %v959
                %v961 = vld [vmem:[%s953 + $0x18] sm:%s944]
                %962 = vst [vmem:[%s954 + $0x18] sm:%s944] %v961
                %v963 = vld [vmem:[%s953 + $0x20] sm:%s944]
                %964 = vst [vmem:[%s954 + $0x20] sm:%s944] %v963
                %v965 = vld [vmem:[%s953 + $0x28] sm:%s944]
                %966 = vst [vmem:[%s954 + $0x28] sm:%s944] %v965
                %v967 = vld [vmem:[%s953 + $0x30] sm:%s944]
                %968 = vst [vmem:[%s954 + $0x30] sm:%s944] %v967
                %v969 = vld [vmem:[%s953 + $0x38] sm:%s944]
                %970 = vst [vmem:[%s954 + $0x38] sm:%s944] %v969
                %v971 = vld [vmem:[%s953 + $0x40] sm:%s944]
                %972 = vst [vmem:[%s954 + $0x40] sm:%s944] %v971
                %v973 = vld [vmem:[%s953 + $0x48] sm:%s944]
                %974 = vst [vmem:[%s954 + $0x48] sm:%s944] %v973
                %v975 = vld [vmem:[%s953 + $0x50] sm:%s944]
                %976 = vst [vmem:[%s954 + $0x50] sm:%s944] %v975
                %v977 = vld [vmem:[%s953 + $0x58] sm:%s944]
                %978 = vst [vmem:[%s954 + $0x58] sm:%s944] %v977
                %v979 = vld [vmem:[%s953 + $0x60] sm:%s944]
                %980 = vst [vmem:[%s954 + $0x60] sm:%s944] %v979
                %v981 = vld [vmem:[%s953 + $0x68] sm:%s944]
                %982 = vst [vmem:[%s954 + $0x68] sm:%s944] %v981
                %v983 = vld [vmem:[%s953 + $0x70] sm:%s944]
                %984 = vst [vmem:[%s954 + $0x70] sm:%s944] %v983
                %v985 = vld [vmem:[%s953 + $0x78] sm:%s944]
                %986 = vst [vmem:[%s954 + $0x78] sm:%s944] %v985
                %v987 = vld [vmem:[%s953 + $0x80] sm:%s944]
                %988 = vst [vmem:[%s954 + $0x80] sm:%s944] %v987
                %v989 = vld [vmem:[%s953 + $0x88] sm:%s944]
                %990 = vst [vmem:[%s954 + $0x88] sm:%s944] %v989
                %v991 = vld [vmem:[%s953 + $0x90] sm:%s944]
                %992 = vst [vmem:[%s954 + $0x90] sm:%s944] %v991
                %v993 = vld [vmem:[%s953 + $0x98] sm:%s944]
                %994 = vst [vmem:[%s954 + $0x98] sm:%s944] %v993
                %v995 = vld [vmem:[%s953 + $0xa0] sm:%s944]
                %996 = vst [vmem:[%s954 + $0xa0] sm:%s944] %v995
                %v997 = vld [vmem:[%s953 + $0xa8] sm:%s944]
                %998 = vst [vmem:[%s954 + $0xa8] sm:%s944] %v997
                %v999 = vld [vmem:[%s953 + $0xb0] sm:%s944]
                %1000 = vst [vmem:[%s954 + $0xb0] sm:%s944] %v999
                %v1001 = vld [vmem:[%s953 + $0xb8] sm:%s944]
                %1002 = vst [vmem:[%s954 + $0xb8] sm:%s944] %v1001
                %v1003 = vld [vmem:[%s953 + $0xc0] sm:%s944]
                %1004 = vst [vmem:[%s954 + $0xc0] sm:%s944] %v1003
                %v1005 = vld [vmem:[%s953 + $0xc8] sm:%s944]
                %1006 = vst [vmem:[%s954 + $0xc8] sm:%s944] %v1005
                %v1007 = vld [vmem:[%s953 + $0xd0] sm:%s944]
                %1008 = vst [vmem:[%s954 + $0xd0] sm:%s944] %v1007
                %v1009 = vld [vmem:[%s953 + $0xd8] sm:%s944]
                %1010 = vst [vmem:[%s954 + $0xd8] sm:%s944] %v1009
                %v1011 = vld [vmem:[%s953 + $0xe0] sm:%s944]
                %1012 = vst [vmem:[%s954 + $0xe0] sm:%s944] %v1011
                %v1013 = vld [vmem:[%s953 + $0xe8] sm:%s944]
                %1014 = vst [vmem:[%s954 + $0xe8] sm:%s944] %v1013
                %v1015 = vld [vmem:[%s953 + $0xf0] sm:%s944]
                %1016 = vst [vmem:[%s954 + $0xf0] sm:%s944] %v1015
                %v1017 = vld [vmem:[%s953 + $0xf8] sm:%s944]
                %1018 = vst [vmem:[%s954 + $0xf8] sm:%s944] %v1017
                %v1019 = vld [vmem:[%s953 + $0x100] sm:%s944]
                %1020 = vst [vmem:[%s954 + $0x100] sm:%s944] %v1019
                %v1021 = vld [vmem:[%s953 + $0x108] sm:%s944]
                %1022 = vst [vmem:[%s954 + $0x108] sm:%s944] %v1021
                %v1023 = vld [vmem:[%s953 + $0x110] sm:%s944]
                %1024 = vst [vmem:[%s954 + $0x110] sm:%s944] %v1023
                %v1025 = vld [vmem:[%s953 + $0x118] sm:%s944]
                %1026 = vst [vmem:[%s954 + $0x118] sm:%s944] %v1025
                %v1027 = vld [vmem:[%s953 + $0x120] sm:%s944]
                %1028 = vst [vmem:[%s954 + $0x120] sm:%s944] %v1027
                %v1029 = vld [vmem:[%s953 + $0x128] sm:%s944]
                %1030 = vst [vmem:[%s954 + $0x128] sm:%s944] %v1029
                %v1031 = vld [vmem:[%s953 + $0x130] sm:%s944]
                %1032 = vst [vmem:[%s954 + $0x130] sm:%s944] %v1031
                %v1033 = vld [vmem:[%s953 + $0x138] sm:%s944]
                %1034 = vst [vmem:[%s954 + $0x138] sm:%s944] %v1033
                %v1035 = vld [vmem:[%s953 + $0x140] sm:%s944]
                %1036 = vst [vmem:[%s954 + $0x140] sm:%s944] %v1035
                %v1037 = vld [vmem:[%s953 + $0x148] sm:%s944]
                %1038 = vst [vmem:[%s954 + $0x148] sm:%s944] %v1037
                %v1039 = vld [vmem:[%s953 + $0x150] sm:%s944]
                %1040 = vst [vmem:[%s954 + $0x150] sm:%s944] %v1039
                %v1041 = vld [vmem:[%s953 + $0x158] sm:%s944]
                %1042 = vst [vmem:[%s954 + $0x158] sm:%s944] %v1041
                %v1043 = vld [vmem:[%s953 + $0x160] sm:%s944]
                %1044 = vst [vmem:[%s954 + $0x160] sm:%s944] %v1043
                %v1045 = vld [vmem:[%s953 + $0x168] sm:%s944]
                %1046 = vst [vmem:[%s954 + $0x168] sm:%s944] %v1045
                %v1047 = vld [vmem:[%s953 + $0x170] sm:%s944]
                %1048 = vst [vmem:[%s954 + $0x170] sm:%s944] %v1047
                %v1049 = vld [vmem:[%s953 + $0x178] sm:%s944]
                %1050 = vst [vmem:[%s954 + $0x178] sm:%s944] %v1049
                %v1051 = vld [vmem:[%s953 + $0x180] sm:%s944]
                %1052 = vst [vmem:[%s954 + $0x180] sm:%s944] %v1051
                %v1053 = vld [vmem:[%s953 + $0x188] sm:%s944]
                %1054 = vst [vmem:[%s954 + $0x188] sm:%s944] %v1053
                %v1055 = vld [vmem:[%s953 + $0x190] sm:%s944]
                %1056 = vst [vmem:[%s954 + $0x190] sm:%s944] %v1055
                %v1057 = vld [vmem:[%s953 + $0x198] sm:%s944]
                %1058 = vst [vmem:[%s954 + $0x198] sm:%s944] %v1057
                %v1059 = vld [vmem:[%s953 + $0x1a0] sm:%s944]
                %1060 = vst [vmem:[%s954 + $0x1a0] sm:%s944] %v1059
                %v1061 = vld [vmem:[%s953 + $0x1a8] sm:%s944]
                %1062 = vst [vmem:[%s954 + $0x1a8] sm:%s944] %v1061
                %v1063 = vld [vmem:[%s953 + $0x1b0] sm:%s944]
                %1064 = vst [vmem:[%s954 + $0x1b0] sm:%s944] %v1063
                %v1065 = vld [vmem:[%s953 + $0x1b8] sm:%s944]
                %1066 = vst [vmem:[%s954 + $0x1b8] sm:%s944] %v1065
                %v1067 = vld [vmem:[%s953 + $0x1c0] sm:%s944]
                %1068 = vst [vmem:[%s954 + $0x1c0] sm:%s944] %v1067
                %v1069 = vld [vmem:[%s953 + $0x1c8] sm:%s944]
                %1070 = vst [vmem:[%s954 + $0x1c8] sm:%s944] %v1069
                %v1071 = vld [vmem:[%s953 + $0x1d0] sm:%s944]
                %1072 = vst [vmem:[%s954 + $0x1d0] sm:%s944] %v1071
                %v1073 = vld [vmem:[%s953 + $0x1d8] sm:%s944]
                %1074 = vst [vmem:[%s954 + $0x1d8] sm:%s944] %v1073
                %v1075 = vld [vmem:[%s953 + $0x1e0] sm:%s944]
                %1076 = vst [vmem:[%s954 + $0x1e0] sm:%s944] %v1075
                %v1077 = vld [vmem:[%s953 + $0x1e8] sm:%s944]
                %1078 = vst [vmem:[%s954 + $0x1e8] sm:%s944] %v1077
                %v1079 = vld [vmem:[%s953 + $0x1f0] sm:%s944]
                %1080 = vst [vmem:[%s954 + $0x1f0] sm:%s944] %v1079
                %v1081 = vld [vmem:[%s953 + $0x1f8] sm:%s944]
                %1082 = vst [vmem:[%s954 + $0x1f8] sm:%s944] %v1081
                %s1083 = sadd.s32 1, %s952
                %p1084 = scmp.ge.s32.totalorder %s1083, %s945
                %s1085 = scalar_select %p1084, 0, %s1083
                %s1086 = smul.u32 %s1085, 512
                %s1087 = smul.u32 %s1085, 512
                %s1088 = scalar_lea.vmem %s924, %s1086 [#allocation2]
                %s1089 = scalar_lea.vmem %s935, %s1087
              $region53: #{tpu_custom_call.1} parent=47 // loop_footer
                %s949 = sadd.s32 %s947, 1
              $region54: #{tpu_custom_call.1} parent=47 // loop_footer_branch
                %946 = sbr.rel target = $region50
              $region55: #{tpu_custom_call.1} parent=47 // loop_exit
                _
              %s1090 = sshrl.u32 %s931, 6
              %s1091 = sand.u32 %s931, 63
              %s1092 = smul.u32 %s1090, 64
              %s1093 = smul.u32 8, %s1092
              %s1094 = scalar_lea.vmem %s924, %s1093 [#allocation2]
              %s1095 = smul.u32 8, %s1092
              %s1096 = scalar_lea.vmem %s935, %s1095
              // While loop
              $region56: #{tpu_custom_call.1} parent=47 // loop_pre_header
                _
              $region57: #{tpu_custom_call.1} parent=47 // loop_header
                %s1098 = sphi 0, %s1100
                %p1099 = scmp.ge.s32.totalorder %s1098, %s1091
                %s1103 = sphi 0, %s1110
                %s1104 = sphi %s1094, %s1113
                %s1105 = sphi %s1096, %s1114
              $region58: #{tpu_custom_call.1} parent=47 // loop_header_branch
                %1102 = sbr.rel (%p1099) target = $region62
              $region59: #{tpu_custom_call.1} parent=47 // loop_body
                %v1106 = vld [vmem:[%s1104] sm:%s944]
                %1107 = vst [vmem:[%s1105] sm:%s944] %v1106
                %s1108 = sadd.s32 1, %s1103
                %p1109 = scmp.ge.s32.totalorder %s1108, %s1091
                %s1110 = scalar_select %p1109, 0, %s1108
                %s1111 = smul.u32 %s1110, 8
                %s1112 = smul.u32 %s1110, 8
                %s1113 = scalar_lea.vmem %s1094, %s1111 [#allocation2]
                %s1114 = scalar_lea.vmem %s1096, %s1112
              $region60: #{tpu_custom_call.1} parent=47 // loop_footer
                %s1100 = sadd.s32 %s1098, 1
              $region61: #{tpu_custom_call.1} parent=47 // loop_footer_branch
                %1097 = sbr.rel target = $region57
              $region62: #{tpu_custom_call.1} parent=47 // loop_exit
                _
            $region48: #{tpu_custom_call.1} parent=39 // pred_fallthru
              _
          $region40: #{tpu_custom_call.1} parent=35 // pred_fallthru
            _
          %1289 = vnop
        $region36: #{tpu_custom_call.1} parent=31 // pred_fallthru
          _
      $region32: #{tpu_custom_call.1} parent=5 // pred_fallthru
        _
      %p1290 = scmp.le.s32.totalorder 2, %s9
      // Predicated region
      $region85: #{tpu_custom_call.1} parent=5 // pred_check
        %p1291 = pneg %p1290
      $region86: #{tpu_custom_call.1} parent=5 // pred_check_branch
        %1293 = sbr.rel (%p1291) target = $region88
      $region87: #{tpu_custom_call.1} parent=5 // pred_region
        %s1294 = ssub.s32 %s9, 2
        // Predicated region
        $region89: #{tpu_custom_call.1} parent=87 // pred_check
          %p1295 = pneg %p106
        $region90: #{tpu_custom_call.1} parent=87 // pred_check_branch
          %1297 = sbr.rel (%p1295) target = $region92
        $region91: #{tpu_custom_call.1} parent=87 // pred_region
          %s1298 = sand.u32 %s91, 1
          %s1299 = sand.u32 %s91, 1
          %s1300 = smul.addr %s1299, 512
          %s1301 = scalar_lea.vmem [#allocation2], %s1300
        $region92: #{tpu_custom_call.1} parent=87 // pred_fallthru
          _
      $region88: #{tpu_custom_call.1} parent=5 // pred_fallthru
        _
    $region6: #{tpu_custom_call.1} parent=1 // loop_footer
      %s13 = sadd.s32 1, %s9
    $region7: #{tpu_custom_call.1} parent=1 // loop_footer_branch
      %8 = sbr.rel target = $region3
    $region8: #{tpu_custom_call.1} parent=1 // loop_exit
      _

</llo_original>
